<compile_context>
chip_gen: v6e
topology: v6e:2x2x1
jax: 0.10.0
libtpu: 0.0.40
codegen_flags: <defaults>
</compile_context>

<pallas_src>
import functools
from typing import NamedTuple

import jax
import jax.numpy as jnp
from jax.experimental import pallas as pl
from jax.experimental.pallas import tpu as pltpu


def _round_up(x, m):
    return (x + m - 1) // m * m


# --------------------------------------------------------------------------
# Per-generation tiling configuration.
# --------------------------------------------------------------------------
_GEN_CFG = {
    # align: MXU-friendly feature alignment; budget: bytes the planner may use
    # for pipelined tiles (leaves headroom below vmem_limit for Mosaic scratch).
    "v5e":     dict(align=128, vmem_limit=100 * 2**20, budget=88 * 2**20,
                    bm_max=512, cores=1),
    "v6e":     dict(align=256, vmem_limit=104 * 2**20, budget=92 * 2**20,
                    bm_max=1024, cores=1),
    "v7x":     dict(align=256, vmem_limit=52 * 2**20, budget=44 * 2**20,
                    bm_max=512, cores=2),
    "default": dict(align=128, vmem_limit=64 * 2**20, budget=52 * 2**20,
                    bm_max=512, cores=1),
}


def _tpu_generation():
    try:
        kind = jax.devices()[0].device_kind.lower().replace(" ", "")
    except Exception:
        return "default"
    if "v5e" in kind or "v5lite" in kind:
        return "v5e"
    if "v6" in kind:
        return "v6e"
    if "v7" in kind or "7x" in kind:
        return "v7x"
    return "default"


class MLPParams(NamedTuple):
    w1p: jax.Array        # (in_p, hid_p)  bf16
    b1p: jax.Array        # (1, hid_p)     f32
    w2p: jax.Array        # (hid_p, out_p) bf16
    b2p: jax.Array        # (1, out_p)     f32
    in_features: int
    hid_features: int
    out_features: int
    in_p: int
    hid_p: int
    out_p: int
    bh: int
    bm_max: int
    cores: int
    vmem_limit: int


def _tile_bytes(bm, bh, in_p, out_p):
    """Conservative VMEM footprint: double-buffered inputs + output + scratch."""
    per_buf = (bm * in_p * 2          # x tile, bf16
               + in_p * bh * 2        # w1 tile, bf16
               + 8 * bh * 4           # b1 tile (sublane-padded), f32
               + bh * out_p * 2       # w2 tile, bf16
               + 8 * out_p * 4)       # b2 tile, f32
    return (2 * per_buf               # double buffering
            + 2 * bm * out_p * 4      # output block (resident / double-buffered)
            + bm * out_p * 4)         # optional f32 accumulator scratch


def prepare_mlp_params(w1, b1, w2, b2):
    """Pad + cast parameters once and plan tile sizes for the local TPU.

    Weights are stored transposed relative to PyTorch: w1 (in, hid), w2 (hid, out).
    """
    in_f, hid_f = w1.shape
    out_f = w2.shape[1]
    cfg = _GEN_CFG.get(_tpu_generation(), _GEN_CFG["default"])
    align = cfg["align"]

    in_p = _round_up(in_f, align)
    out_p = _round_up(out_f, align)
    hid_full = _round_up(hid_f, align)

    budget = cfg["budget"]
    bm_max = cfg["bm_max"]

    # Prefer resident weights (bh == full hidden); otherwise shrink bh, then bm.
    bh = hid_full
    while bh > align and _tile_bytes(bm_max, bh, in_p, out_p) > budget:
        bh = _round_up(max(align, bh // 2), align)
    while bm_max > 16 and _tile_bytes(bm_max, bh, in_p, out_p) > budget:
        bm_max = max(16, bm_max // 2)
    hid_p = _round_up(hid_f, bh)

    w1p = jnp.pad(jnp.asarray(w1, jnp.bfloat16),
                  ((0, in_p - in_f), (0, hid_p - hid_f)))
    b1p = jnp.pad(jnp.asarray(b1, jnp.float32),
                  (0, hid_p - hid_f)).reshape(1, hid_p)
    w2p = jnp.pad(jnp.asarray(w2, jnp.bfloat16),
                  ((0, hid_p - hid_f), (0, out_p - out_f)))
    b2p = jnp.pad(jnp.asarray(b2, jnp.float32),
                  (0, out_p - out_f)).reshape(1, out_p)

    return MLPParams(w1p=w1p, b1p=b1p, w2p=w2p, b2p=b2p,
                     in_features=in_f, hid_features=hid_f, out_features=out_f,
                     in_p=in_p, hid_p=hid_p, out_p=out_p,
                     bh=bh, bm_max=bm_max, cores=cfg["cores"],
                     vmem_limit=cfg["vmem_limit"])


# --------------------------------------------------------------------------
# Kernels.
# --------------------------------------------------------------------------
def _mlp_kernel_f32out(x_ref, w1_ref, b1_ref, w2_ref, b2_ref, o_ref):
    """Output dtype f32: accumulate directly into the resident output block."""
    k = pl.program_id(1)

    @pl.when(k == 0)
    def _init():
        o_ref[...] = jnp.zeros_like(o_ref)

    h = jnp.dot(x_ref[...], w1_ref[...], preferred_element_type=jnp.float32)
    h = jax.nn.gelu(h + b1_ref[...], approximate=True)   # tanh GELU -> EUP
    o_ref[...] += jnp.dot(h.astype(w2_ref.dtype), w2_ref[...],
                          preferred_element_type=jnp.float32)

    @pl.when(k == pl.num_programs(1) - 1)
    def _finalize():
        o_ref[...] += b2_ref[...]


def _mlp_kernel_scratch(x_ref, w1_ref, b1_ref, w2_ref, b2_ref, o_ref, acc_ref):
    """Non-f32 output dtype: f32 scratch accumulator, cast on finalize."""
    k = pl.program_id(1)

    @pl.when(k == 0)
    def _init():
        acc_ref[...] = jnp.zeros_like(acc_ref)

    h = jnp.dot(x_ref[...], w1_ref[...], preferred_element_type=jnp.float32)
    h = jax.nn.gelu(h + b1_ref[...], approximate=True)
    acc_ref[...] += jnp.dot(h.astype(w2_ref.dtype), w2_ref[...],
                            preferred_element_type=jnp.float32)

    @pl.when(k == pl.num_programs(1) - 1)
    def _finalize():
        o_ref[...] = (acc_ref[...] + b2_ref[...]).astype(o_ref.dtype)


# --------------------------------------------------------------------------
# Forward.
# --------------------------------------------------------------------------
@functools.partial(
    jax.jit,
    static_argnames=("in_features", "out_features", "in_p", "hid_p", "out_p",
                     "bm", "bh", "vmem_limit"))
def _mlp_call(x, w1p, b1p, w2p, b2p, *, in_features, out_features,
              in_p, hid_p, out_p, bm, bh, vmem_limit):
    lead_shape = x.shape[:-1]
    x2d = x.reshape(-1, in_features)
    n = x2d.shape[0]
    n_p = _round_up(max(n, 1), bm)

    xd = jnp.pad(x2d.astype(jnp.bfloat16),
                 ((0, n_p - n), (0, in_p - in_features)))

    grid = (n_p // bm, hid_p // bh)
    n_row_tiles, k_tiles = grid

    out_is_f32 = (x.dtype == jnp.float32)
    if out_is_f32:
        kernel = _mlp_kernel_f32out
        scratch_shapes = []
        out_dtype = jnp.float32
    else:
        kernel = _mlp_kernel_scratch
        scratch_shapes = [pltpu.VMEM((bm, out_p), jnp.float32)]
        out_dtype = x.dtype

    # Weights are re-streamed once per row tile only when the hidden axis is
    # tiled; with a single k step they stay VMEM-resident (fetched once).
    weight_stream = n_row_tiles if k_tiles > 1 else 1
    flops = 2 * n_p * (in_p * hid_p + hid_p * out_p)
    bytes_accessed = (xd.size * 2
                      + (w1p.size + w2p.size) * 2 * weight_stream
                      + b1p.size * 4 + b2p.size * 4
                      + n_p * out_p * jnp.dtype(out_dtype).itemsize)
    cost = pl.CostEstimate(flops=flops, transcendentals=n_p * hid_p,
                           bytes_accessed=bytes_accessed)

    out = pl.pallas_call(
        kernel,
        out_shape=jax.ShapeDtypeStruct((n_p, out_p), out_dtype),
        grid_spec=pltpu.PrefetchScalarGridSpec(
            num_scalar_prefetch=0,
            grid=grid,
            in_specs=[
                pl.BlockSpec((bm, in_p), lambda i, k: (i, 0)),
                pl.BlockSpec((in_p, bh), lambda i, k: (0, k)),
                pl.BlockSpec((1, bh), lambda i, k: (0, k)),
                pl.BlockSpec((bh, out_p), lambda i, k: (k, 0)),
                pl.BlockSpec((1, out_p), lambda i, k: (0, 0)),
            ],
            out_specs=pl.BlockSpec((bm, out_p), lambda i, k: (i, 0)),
            scratch_shapes=scratch_shapes,
        ),
        compiler_params=pltpu.CompilerParams(
            dimension_semantics=("parallel", "arbitrary"),
            vmem_limit_bytes=vmem_limit),
        cost_estimate=cost,
    )(xd, w1p, b1p, w2p, b2p)

    out = out[:n, :out_features].astype(x.dtype)
    return out.reshape(*lead_shape, out_features)


def mlp_forward(x, params: MLPParams):
    """x: (..., in_features); params from prepare_mlp_params (padded once)."""
    n = 1
    for d in x.shape[:-1]:
        n *= d
    n16 = _round_up(max(n, 1), 16)
    bm = min(params.bm_max, n16)
    if params.cores >= 2:
        # Give every TensorCore at least one row tile on multi-core chips.
        per_core = _round_up(-(-n16 // params.cores), 16)
        bm = min(bm, max(16, per_core))
    return _mlp_call(
        x, params.w1p, params.b1p, params.w2p, params.b2p,
        in_features=params.in_features, out_features=params.out_features,
        in_p=params.in_p, hid_p=params.hid_p, out_p=params.out_p,
        bm=bm, bh=params.bh, vmem_limit=params.vmem_limit)


# --------------------------------------------------------------------------
# Parameter init (mimics nn.Linear's uniform +/- 1/sqrt(fan_in)).
# --------------------------------------------------------------------------
def init_mlp_params(key, in_features, hid_features, out_features,
                    dtype=jnp.float32):
    """Weights stored transposed relative to PyTorch: (in, out)."""
    k1, k2, k3, k4 = jax.random.split(key, 4)
    lim1 = 1.0 / (in_features ** 0.5)
    lim2 = 1.0 / (hid_features ** 0.5)
    w1 = jax.random.uniform(k1, (in_features, hid_features), dtype,
                            minval=-lim1, maxval=lim1)
    b1 = jax.random.uniform(k2, (hid_features,), dtype,
                            minval=-lim1, maxval=lim1)
    w2 = jax.random.uniform(k3, (hid_features, out_features), dtype,
                            minval=-lim2, maxval=lim2)
    b2 = jax.random.uniform(k4, (out_features,), dtype,
                            minval=-lim2, maxval=lim2)
    return w1, b1, w2, b2


if __name__ == "__main__":
    key = jax.random.PRNGKey(0)
    batch, seq = 2, 8
    in_features, hid_features, out_features = 32, 64, 32

    kx, kp = jax.random.split(key)
    x = jax.random.normal(kx, (batch, seq, in_features), jnp.float32)
    w1, b1, w2, b2 = init_mlp_params(kp, in_features, hid_features,
                                     out_features)

    params = prepare_mlp_params(w1, b1, w2, b2)   # pad/cast once
    out = mlp_forward(x, params)
    jax.block_until_ready(out)

    # Reference with matching precision (bf16 MXU matmuls, f32 accumulate,
    # tanh-GELU epilogue in f32).
    x2d = x.reshape(-1, in_features)
    h_ref = jax.nn.gelu(
        jnp.dot(x2d.astype(jnp.bfloat16), w1.astype(jnp.bfloat16),
                preferred_element_type=jnp.float32) + b1,
        approximate=True)
    out_ref = jnp.dot(h_ref.astype(jnp.bfloat16), w2.astype(jnp.bfloat16),
                      preferred_element_type=jnp.float32) + b2
    out_ref = out_ref.reshape(batch, seq, out_features)

    assert out.shape == (batch, seq, out_features)
    assert jnp.allclose(out, out_ref, atol=2e-2, rtol=2e-2), float(
        jnp.max(jnp.abs(out - out_ref)))

    print("KERNEL_OK")
</pallas_src>

<mosaic_0001>
module attributes {stable_mosaic.version = 11 : i64} {
  func.func @_mlp_kernel_f32out(%arg0: i32, %arg1: i32, %arg2: memref<16x128xbf16, #tpu.memory_space<vmem>>, %arg3: memref<128x128xbf16, #tpu.memory_space<vmem>>, %arg4: memref<1x128xf32, #tpu.memory_space<vmem>>, %arg5: memref<128x128xbf16, #tpu.memory_space<vmem>>, %arg6: memref<1x128xf32, #tpu.memory_space<vmem>>, %arg7: memref<16x128xf32, #tpu.memory_space<vmem>>) attributes {dimension_semantics = [#tpu.dimension_semantics<parallel>, #tpu.dimension_semantics<arbitrary>], iteration_bounds = array<i64: 1, 1>, scalar_prefetch = 0 : i64, scratch_operands = 0 : i64, tpu.core_type = #tpu.core_type<tc>, window_params = [{transform_indices = @transform_0, window_bounds = array<i64: 16, 128>}, {transform_indices = @transform_1, window_bounds = array<i64: 128, 128>}, {transform_indices = @transform_2, window_bounds = array<i64: 1, 128>}, {transform_indices = @transform_3, window_bounds = array<i64: 128, 128>}, {pipeline_mode = #tpu.pipeline_mode<synchronous>, transform_indices = @transform_4, window_bounds = array<i64: 1, 128>}, {transform_indices = @transform_5, window_bounds = array<i64: 16, 128>}]} {
    %c0_i32 = arith.constant 0 : i32
    %0 = arith.cmpi eq, %arg1, %c0_i32 : i32
    %1 = arith.extui %0 : i1 to i32
    %c0_i32_0 = arith.constant 0 : i32
    %2 = arith.cmpi ne, %1, %c0_i32_0 : i32
    scf.if %2 {
      %cst_19 = arith.constant 0.000000e+00 : f32
      %31 = vector.broadcast %cst_19 : f32 to vector<16x128xf32>
      %c0_20 = arith.constant 0 : index
      %c0_21 = arith.constant 0 : index
      %32 = vector.load %arg7[%c0_20, %c0_21] : memref<16x128xf32, #tpu.memory_space<vmem>>, vector<16x128xf32>
      tpu.vector_store %arg7[%c0_20, %c0_21], %31 {strides = array<i32>} : memref<16x128xf32, #tpu.memory_space<vmem>>, vector<16x128xf32>,
    } else {
    }
    %c0 = arith.constant 0 : index
    %c0_1 = arith.constant 0 : index
    %3 = vector.load %arg2[%c0, %c0_1] : memref<16x128xbf16, #tpu.memory_space<vmem>>, vector<16x128xbf16>
    %c0_2 = arith.constant 0 : index
    %c0_3 = arith.constant 0 : index
    %4 = vector.load %arg3[%c0_2, %c0_3] : memref<128x128xbf16, #tpu.memory_space<vmem>>, vector<128x128xbf16>
    %cst = arith.constant dense<0.000000e+00> : vector<16x128xf32>
    %5 = tpu.matmul %3, %4, %cst {dimension_numbers = #tpu.dot_dimension_numbers<[1], [0], [0], [1], [0, 0, 1, 1], [], []>} : vector<16x128xbf16>, vector<128x128xbf16>, vector<16x128xf32> -> vector<16x128xf32>
    %c0_4 = arith.constant 0 : index
    %c0_5 = arith.constant 0 : index
    %6 = vector.load %arg4[%c0_4, %c0_5] : memref<1x128xf32, #tpu.memory_space<vmem>>, vector<1x128xf32>
    %7 = vector.broadcast %6 : vector<1x128xf32> to vector<16x128xf32>
    %8 = arith.addf %5, %7 : vector<16x128xf32>
    %9 = arith.mulf %8, %8 : vector<16x128xf32>
    %10 = arith.mulf %8, %9 : vector<16x128xf32>
    %cst_6 = arith.constant 4.471500e-02 : f32
    %11 = vector.broadcast %cst_6 : f32 to vector<16x128xf32>
    %12 = arith.mulf %11, %10 : vector<16x128xf32>
    %13 = arith.addf %8, %12 : vector<16x128xf32>
    %cst_7 = arith.constant 0.797884583 : f32
    %14 = vector.broadcast %cst_7 : f32 to vector<16x128xf32>
    %15 = arith.mulf %14, %13 : vector<16x128xf32>
    %16 = math.tanh %15 : vector<16x128xf32>
    %cst_8 = arith.constant 1.000000e+00 : f32
    %17 = vector.broadcast %cst_8 : f32 to vector<16x128xf32>
    %18 = arith.addf %17, %16 : vector<16x128xf32>
    %cst_9 = arith.constant 5.000000e-01 : f32
    %19 = vector.broadcast %cst_9 : f32 to vector<16x128xf32>
    %20 = arith.mulf %19, %18 : vector<16x128xf32>
    %21 = arith.mulf %8, %20 : vector<16x128xf32>
    %c0_10 = arith.constant 0 : index
    %c0_11 = arith.constant 0 : index
    %22 = vector.load %arg7[%c0_10, %c0_11] : memref<16x128xf32, #tpu.memory_space<vmem>>, vector<16x128xf32>
    %23 = arith.truncf %21 : vector<16x128xf32> to vector<16x128xbf16>
    %c0_12 = arith.constant 0 : index
    %c0_13 = arith.constant 0 : index
    %24 = vector.load %arg5[%c0_12, %c0_13] : memref<128x128xbf16, #tpu.memory_space<vmem>>, vector<128x128xbf16>
    %cst_14 = arith.constant dense<0.000000e+00> : vector<16x128xf32>
    %25 = tpu.matmul %23, %24, %cst_14 {dimension_numbers = #tpu.dot_dimension_numbers<[1], [0], [0], [1], [0, 0, 1, 1], [], []>} : vector<16x128xbf16>, vector<128x128xbf16>, vector<16x128xf32> -> vector<16x128xf32>
    %26 = arith.addf %22, %25 : vector<16x128xf32>
    %c0_15 = arith.constant 0 : index
    %c0_16 = arith.constant 0 : index
    %27 = vector.load %arg7[%c0_15, %c0_16] : memref<16x128xf32, #tpu.memory_space<vmem>>, vector<16x128xf32>
    tpu.vector_store %arg7[%c0_15, %c0_16], %26 {strides = array<i32>} : memref<16x128xf32, #tpu.memory_space<vmem>>, vector<16x128xf32>,
    %c0_i32_17 = arith.constant 0 : i32
    %28 = arith.cmpi eq, %arg1, %c0_i32_17 : i32
    %29 = arith.extui %28 : i1 to i32
    %c0_i32_18 = arith.constant 0 : i32
    %30 = arith.cmpi ne, %29, %c0_i32_18 : i32
    scf.if %30 {
      %c0_19 = arith.constant 0 : index
      %c0_20 = arith.constant 0 : index
      %31 = vector.load %arg7[%c0_19, %c0_20] : memref<16x128xf32, #tpu.memory_space<vmem>>, vector<16x128xf32>
      %c0_21 = arith.constant 0 : index
      %c0_22 = arith.constant 0 : index
      %32 = vector.load %arg6[%c0_21, %c0_22] : memref<1x128xf32, #tpu.memory_space<vmem>>, vector<1x128xf32>
      %33 = vector.broadcast %32 : vector<1x128xf32> to vector<16x128xf32>
      %34 = arith.addf %31, %33 : vector<16x128xf32>
      %c0_23 = arith.constant 0 : index
      %c0_24 = arith.constant 0 : index
      %35 = vector.load %arg7[%c0_23, %c0_24] : memref<16x128xf32, #tpu.memory_space<vmem>>, vector<16x128xf32>
      tpu.vector_store %arg7[%c0_23, %c0_24], %34 {strides = array<i32>} : memref<16x128xf32, #tpu.memory_space<vmem>>, vector<16x128xf32>,
    } else {
    }
    return
  }
  func.func @transform_0(%arg0: i32, %arg1: i32) -> (i32, i32) {
    %c0_i32 = arith.constant 0 : i32
    %c0_i32_0 = arith.constant 0 : i32
    return %arg0, %c0_i32 : i32, i32
  }
  func.func @transform_1(%arg0: i32, %arg1: i32) -> (i32, i32) {
    %c0_i32 = arith.constant 0 : i32
    %c0_i32_0 = arith.constant 0 : i32
    return %c0_i32, %arg1 : i32, i32
  }
  func.func @transform_2(%arg0: i32, %arg1: i32) -> (i32, i32) {
    %c0_i32 = arith.constant 0 : i32
    %c0_i32_0 = arith.constant 0 : i32
    return %c0_i32, %arg1 : i32, i32
  }
  func.func @transform_3(%arg0: i32, %arg1: i32) -> (i32, i32) {
    %c0_i32 = arith.constant 0 : i32
    %c0_i32_0 = arith.constant 0 : i32
    return %arg1, %c0_i32 : i32, i32
  }
  func.func @transform_4(%arg0: i32, %arg1: i32) -> (i32, i32) {
    %c0_i32 = arith.constant 0 : i32
    %c0_i32_0 = arith.constant 0 : i32
    %c0_i32_1 = arith.constant 0 : i32
    return %c0_i32, %c0_i32_0 : i32, i32
  }
  func.func @transform_5(%arg0: i32, %arg1: i32) -> (i32, i32) {
    %c0_i32 = arith.constant 0 : i32
    %c0_i32_0 = arith.constant 0 : i32
    return %arg0, %c0_i32 : i32, i32
  }
}

</mosaic_0001>

<llo_original>
// kernel: _mlp_call.1
$region0: #{_mlp_call.1}
  #allocation0 [shape = 'u32[]', space=smem, size = 0x4, offset = 0x4, fixed_abs, tag = 'smem constant byte address 0x4 - core index']
  #allocation1 [shape = 'u32[144,128]{1,0:T(1,128)}', space=vmem, size = 0x12000, scoped, tag = 'internal scratch']
  %s0 = inlined_call_operand.vmem [shape: bf16[16,128], index: 0, kind: input, shape index: {}]
  %s1 = inlined_call_operand.hbm [shape: bf16[128,128], index: 1, kind: input, shape index: {}]
  %s2 = inlined_call_operand.vmem [shape: f32[1,128], index: 2, kind: input, shape index: {}]
  %s3 = inlined_call_operand.hbm [shape: bf16[128,128], index: 3, kind: input, shape index: {}]
  %s4 = inlined_call_operand.vmem [shape: f32[1,128], index: 4, kind: input, shape index: {}]
  %s5 = inlined_call_operand.vmem [shape: f32[16,128], index: 5, kind: output, shape index: {}]
  %s6 = sld [smem:[#allocation0]]
  $region46: #{_mlp_call.1} parent=0
    _
  %s8 = ssub.s32 1, %s6
  %s9 = scalar_select 0, %s8, %s6
  $region1: #{_mlp_call.1} parent=0
    #allocation2 [shape = 'u8[32768]{0}', space=vmem, size = 0x8000, scoped, tag = 'input window, operand 1, single buffered']
    #allocation3 [shape = 's32[1]{0}', space=sflag, size = 0x4, scoped, tag = 'scoped memory for _mlp_call.1']
    #allocation4 [shape = 'u8[32768]{0}', space=vmem, size = 0x8000, scoped, tag = 'input window, operand 3, single buffered']
    #allocation5 [shape = 's32[1]{0}', space=sflag, size = 0x4, scoped, tag = 'scoped memory for _mlp_call.1']
    %10 = vsyncpa [#allocation3], 0
    %11 = vsyncpa [#allocation5], 0
    // Predicated region
    $region2: #{_mlp_call.1} parent=1 // pred_check
      _
    $region3: #{_mlp_call.1} parent=1 // pred_check_branch
      %13 = sbr.rel (0) target = $region5
    $region4: #{_mlp_call.1} parent=1 // pred_region
      _
    $region5: #{_mlp_call.1} parent=1 // pred_fallthru
      _
    // Predicated region
    $region6: #{_mlp_call.1} parent=1 // pred_check
      _
    $region7: #{_mlp_call.1} parent=1 // pred_check_branch
      %15 = sbr.rel (0) target = $region9
    $region8: #{_mlp_call.1} parent=1 // pred_region
      %s17 = ssub.s32 1024, 1024
      %18 = vsyncadd [#allocation3], %s17
      %s19 = sshll.u32 [#allocation2], 4
      %s20 = int_to_ptr.vmem [resolvable:$true] %s19
      %25 = dma.hbm_to_vmem [thread:$0]  %s1, 1024, %s20, [#allocation3], 64, 64, 4
    $region9: #{_mlp_call.1} parent=1 // pred_fallthru
      _
    // Predicated region
    $region10: #{_mlp_call.1} parent=1 // pred_check
      _
    $region11: #{_mlp_call.1} parent=1 // pred_check_branch
      %27 = sbr.rel (0) target = $region13
    $region12: #{_mlp_call.1} parent=1 // pred_region
      _
    $region13: #{_mlp_call.1} parent=1 // pred_fallthru
      _
    // Predicated region
    $region14: #{_mlp_call.1} parent=1 // pred_check
      _
    $region15: #{_mlp_call.1} parent=1 // pred_check_branch
      %29 = sbr.rel (0) target = $region17
    $region16: #{_mlp_call.1} parent=1 // pred_region
      %s31 = ssub.s32 1024, 1024
      %32 = vsyncadd [#allocation5], %s31
      %s33 = sshll.u32 [#allocation4], 4
      %s34 = int_to_ptr.vmem [resolvable:$true] %s33
      %39 = dma.hbm_to_vmem [thread:$0]  %s3, 1024, %s34, [#allocation5], 64, 64, 4
    $region17: #{_mlp_call.1} parent=1 // pred_fallthru
      _
    // Predicated region
    $region18: #{_mlp_call.1} parent=1 // pred_check
      _
    $region19: #{_mlp_call.1} parent=1 // pred_check_branch
      %41 = sbr.rel (0) target = $region21
    $region20: #{_mlp_call.1} parent=1 // pred_region
      _
    $region21: #{_mlp_call.1} parent=1 // pred_fallthru
      _
    // Predicated region
    $region22: #{_mlp_call.1} parent=1 // pred_check
      _
    $region23: #{_mlp_call.1} parent=1 // pred_check_branch
      %43 = sbr.rel (0) target = $region25
    $region24: #{_mlp_call.1} parent=1 // pred_region
      %44 = dma.done [#allocation3], 1024
    $region25: #{_mlp_call.1} parent=1 // pred_fallthru
      _
    // Predicated region
    $region26: #{_mlp_call.1} parent=1 // pred_check
      _
    $region27: #{_mlp_call.1} parent=1 // pred_check_branch
      %46 = sbr.rel (0) target = $region29
    $region28: #{_mlp_call.1} parent=1 // pred_region
      %47 = dma.done [#allocation5], 1024
    $region29: #{_mlp_call.1} parent=1 // pred_fallthru
      _
    %p49 = scmp.eq.s32.totalorder 0, 0
    // Predicated region
    $region30: #{_mlp_call.1} parent=1 // pred_check
      %p50 = pneg %p49
    $region31: #{_mlp_call.1} parent=1 // pred_check_branch
      %52 = sbr.rel (%p50) target = $region33
    $region32: #{_mlp_call.1} parent=1 // pred_region
      %53 = vst [vmem:[%s5] sm:$0xff] 0.0
      %54 = vst [vmem:[%s5 + $0x8] sm:$0xff] 0.0
    $region33: #{_mlp_call.1} parent=1 // pred_fallthru
      _
    %v55 = vld [vmem:[%s0] sm:$0xf]
    %v56 = vld [vmem:[%s0 + $0x4] sm:$0xf]
    %v57 = vld [vmem:[#allocation2] sm:$0xf]
    %v58 = vld [vmem:[#allocation2 + $0x4] sm:$0xf]
    %v59 = vld [vmem:[#allocation2 + $0x8] sm:$0xf]
    %v60 = vld [vmem:[#allocation2 + $0xc] sm:$0xf]
    %v61 = vld [vmem:[#allocation2 + $0x10] sm:$0xf]
    %v62 = vld [vmem:[#allocation2 + $0x14] sm:$0xf]
    %v63 = vld [vmem:[#allocation2 + $0x18] sm:$0xf]
    %v64 = vld [vmem:[#allocation2 + $0x1c] sm:$0xf]
    %v65 = vld [vmem:[#allocation2 + $0x20] sm:$0xf]
    %v66 = vld [vmem:[#allocation2 + $0x24] sm:$0xf]
    %v67 = vld [vmem:[#allocation2 + $0x28] sm:$0xf]
    %v68 = vld [vmem:[#allocation2 + $0x2c] sm:$0xf]
    %v69 = vld [vmem:[#allocation2 + $0x30] sm:$0xf]
    %v70 = vld [vmem:[#allocation2 + $0x34] sm:$0xf]
    %v71 = vld [vmem:[#allocation2 + $0x38] sm:$0xf]
    %v72 = vld [vmem:[#allocation2 + $0x3c] sm:$0xf]
    %v73 = vld [vmem:[%s2] sm:$0x1]
    %v75 = vlaneseq
    %v76 = vshrl.u32 %v75, 7
    %v77 = vsub.s32 0, %v76
    %v78 = vrot.slane %v73, %v77
    %v82 = vunpack.c.l.b16 %v55
    %v83 = vunpack.c.l.b16 %v56
    %v84 = vpack.c.b16 %v83, %v82
    %v102 = vunpack.c.l.b16 %v57
    %v103 = vunpack.c.l.b16 %v58
    %v104 = vunpack.c.l.b16 %v59
    %v105 = vunpack.c.l.b16 %v60
    %v106 = vunpack.c.l.b16 %v61
    %v107 = vunpack.c.l.b16 %v62
    %v108 = vunpack.c.l.b16 %v63
    %v109 = vunpack.c.l.b16 %v64
    %v110 = vunpack.c.l.b16 %v65
    %v111 = vunpack.c.l.b16 %v66
    %v112 = vunpack.c.l.b16 %v67
    %v113 = vunpack.c.l.b16 %v68
    %v114 = vunpack.c.l.b16 %v69
    %v115 = vunpack.c.l.b16 %v70
    %v116 = vunpack.c.l.b16 %v71
    %v117 = vunpack.c.l.b16 %v72
    %v118 = vpack.c.b16 %v103, %v102
    %v119 = vpack.c.b16 %v105, %v104
    %v120 = vpack.c.b16 %v107, %v106
    %v121 = vpack.c.b16 %v109, %v108
    %v122 = vpack.c.b16 %v111, %v110
    %v123 = vpack.c.b16 %v113, %v112
    %v124 = vpack.c.b16 %v115, %v114
    %v125 = vpack.c.b16 %v117, %v116
    %134 = vmatprep.subr.bf16.mxu0 0
    %135 = vmatpush1.bf16.msra.mxu0 %v125
    %136 = vmatprep.subr.bf16.mxu0 0
    %137 = vmatpush1.bf16.msra.mxu0 %v124
    %138 = vmatprep.subr.bf16.mxu0 0
    %139 = vmatpush1.bf16.msra.mxu0 %v123
    %140 = vmatprep.subr.bf16.mxu0 0
    %141 = vmatpush1.bf16.msra.mxu0 %v122
    %142 = vmatprep.subr.bf16.mxu0 0
    %143 = vmatpush1.bf16.msra.mxu0 %v121
    %144 = vmatprep.subr.bf16.mxu0 0
    %145 = vmatpush1.bf16.msra.mxu0 %v120
    %146 = vmatprep.subr.bf16.mxu0 0
    %147 = vmatpush1.bf16.msra.mxu0 %v119
    %148 = vmatprep.subr.bf16.mxu0 0
    %149 = vmatpush1.bf16.msra.mxu0 %v118
    %150 = vmatprep.subr.bf16.mxu0 0
    %151 = vmatpush2.bf16.msra.mxu0 0
    %152 = vmatprep.subr.bf16.mxu0 0
    %153 = vmatpush2.bf16.msra.mxu0 0
    %154 = vmatprep.subr.bf16.mxu0 0
    %155 = vmatpush2.bf16.msra.mxu0 0
    %156 = vmatprep.subr.bf16.mxu0 0
    %157 = vmatpush2.bf16.msra.mxu0 0
    %158 = vmatprep.subr.bf16.mxu0 0
    %159 = vmatpush2.bf16.msra.mxu0 0
    %160 = vmatprep.subr.bf16.mxu0 0
    %161 = vmatpush2.bf16.msra.mxu0 0
    %162 = vmatprep.subr.bf16.mxu0 0
    %163 = vmatpush2.bf16.msra.mxu0 0
    %164 = vmatprep.subr.bf16.mxu0 0
    %165 = vmatpush2.bf16.msra.mxu0 0
    %166 = vmatprep.mubr.bf16.mxu0 0
    %167 = vmatmul.mubr.bf16.gmra.mxu0 %v84
    %v168 = vpop.f32.mrf.mxu0
    %v169 = vadd.f32 %v78, %v168
    %v170 = vpop.f32.mrf.mxu0
    %v171 = vpop.f32.mrf.mxu0
    %v172 = vadd.f32 %v78, %v171
    %v173 = vpop.f32.mrf.mxu0
    %174 = vdwg.mxu0
    %v175 = vmul.f32 %v169, %v169
    %v176 = vmul.f32 %v172, %v172
    %v177 = vmul.f32 %v169, %v175
    %v178 = vmul.f32 %v172, %v176
    %v179 = vmul.f32 %v177, 0.044715
    %v180 = vmul.f32 %v178, 0.044715
    %v181 = vadd.f32 %v169, %v179
    %v182 = vadd.f32 %v172, %v180
    %v183 = vmul.f32 %v181, 0.7978846
    %v184 = vmul.f32 %v182, 0.7978846
    %v185 = vtanh.pop %v183
    %v186 = vtanh.pop %v184
    %v187 = vadd.f32 %v185, 1.0
    %v188 = vadd.f32 %v186, 1.0
    %v189 = vmul.f32 %v187, 0.5
    %v190 = vmul.f32 %v188, 0.5
    %v191 = vmul.f32 %v169, %v189
    %v192 = vmul.f32 %v172, %v190
    %v193 = vld [vmem:[%s5] sm:$0xff]
    %v194 = vld [vmem:[%s5 + $0x8] sm:$0xff]
    %v195 = vpack.c.bf16 %v192, %v191
    %v196 = vld [vmem:[#allocation4] sm:$0xf]
    %v197 = vld [vmem:[#allocation4 + $0x4] sm:$0xf]
    %v198 = vld [vmem:[#allocation4 + $0x8] sm:$0xf]
    %v199 = vld [vmem:[#allocation4 + $0xc] sm:$0xf]
    %v200 = vld [vmem:[#allocation4 + $0x10] sm:$0xf]
    %v201 = vld [vmem:[#allocation4 + $0x14] sm:$0xf]
    %v202 = vld [vmem:[#allocation4 + $0x18] sm:$0xf]
    %v203 = vld [vmem:[#allocation4 + $0x1c] sm:$0xf]
    %v204 = vld [vmem:[#allocation4 + $0x20] sm:$0xf]
    %v205 = vld [vmem:[#allocation4 + $0x24] sm:$0xf]
    %v206 = vld [vmem:[#allocation4 + $0x28] sm:$0xf]
    %v207 = vld [vmem:[#allocation4 + $0x2c] sm:$0xf]
    %v208 = vld [vmem:[#allocation4 + $0x30] sm:$0xf]
    %v209 = vld [vmem:[#allocation4 + $0x34] sm:$0xf]
    %v210 = vld [vmem:[#allocation4 + $0x38] sm:$0xf]
    %v211 = vld [vmem:[#allocation4 + $0x3c] sm:$0xf]
    %v228 = vunpack.c.l.b16 %v196
    %v229 = vunpack.c.l.b16 %v197
    %v230 = vunpack.c.l.b16 %v198
    %v231 = vunpack.c.l.b16 %v199
    %v232 = vunpack.c.l.b16 %v200
    %v233 = vunpack.c.l.b16 %v201
    %v234 = vunpack.c.l.b16 %v202
    %v235 = vunpack.c.l.b16 %v203
    %v236 = vunpack.c.l.b16 %v204
    %v237 = vunpack.c.l.b16 %v205
    %v238 = vunpack.c.l.b16 %v206
    %v239 = vunpack.c.l.b16 %v207
    %v240 = vunpack.c.l.b16 %v208
    %v241 = vunpack.c.l.b16 %v209
    %v242 = vunpack.c.l.b16 %v210
    %v243 = vunpack.c.l.b16 %v211
    %v244 = vpack.c.b16 %v229, %v228
    %v245 = vpack.c.b16 %v231, %v230
    %v246 = vpack.c.b16 %v233, %v232
    %v247 = vpack.c.b16 %v235, %v234
    %v248 = vpack.c.b16 %v237, %v236
    %v249 = vpack.c.b16 %v239, %v238
    %v250 = vpack.c.b16 %v241, %v240
    %v251 = vpack.c.b16 %v243, %v242
    %260 = vmatprep.subr.bf16.mxu0 0
    %261 = vmatpush1.bf16.msra.mxu0 %v251
    %262 = vmatprep.subr.bf16.mxu0 0
    %263 = vmatpush1.bf16.msra.mxu0 %v250
    %264 = vmatprep.subr.bf16.mxu0 0
    %265 = vmatpush1.bf16.msra.mxu0 %v249
    %266 = vmatprep.subr.bf16.mxu0 0
    %267 = vmatpush1.bf16.msra.mxu0 %v248
    %268 = vmatprep.subr.bf16.mxu0 0
    %269 = vmatpush1.bf16.msra.mxu0 %v247
    %270 = vmatprep.subr.bf16.mxu0 0
    %271 = vmatpush1.bf16.msra.mxu0 %v246
    %272 = vmatprep.subr.bf16.mxu0 0
    %273 = vmatpush1.bf16.msra.mxu0 %v245
    %274 = vmatprep.subr.bf16.mxu0 0
    %275 = vmatpush1.bf16.msra.mxu0 %v244
    %276 = vmatprep.subr.bf16.mxu0 0
    %277 = vmatpush2.bf16.msra.mxu0 0
    %278 = vmatprep.subr.bf16.mxu0 0
    %279 = vmatpush2.bf16.msra.mxu0 0
    %280 = vmatprep.subr.bf16.mxu0 0
    %281 = vmatpush2.bf16.msra.mxu0 0
    %282 = vmatprep.subr.bf16.mxu0 0
    %283 = vmatpush2.bf16.msra.mxu0 0
    %284 = vmatprep.subr.bf16.mxu0 0
    %285 = vmatpush2.bf16.msra.mxu0 0
    %286 = vmatprep.subr.bf16.mxu0 0
    %287 = vmatpush2.bf16.msra.mxu0 0
    %288 = vmatprep.subr.bf16.mxu0 0
    %289 = vmatpush2.bf16.msra.mxu0 0
    %290 = vmatprep.subr.bf16.mxu0 0
    %291 = vmatpush2.bf16.msra.mxu0 0
    %292 = vmatprep.mubr.bf16.mxu0 0
    %293 = vmatmul.mubr.bf16.gmra.mxu0 %v195
    %v294 = vpop.f32.mrf.mxu0
    %v295 = vadd.f32 0.0, %v294
    %v296 = vpop.f32.mrf.mxu0
    %v297 = vpop.f32.mrf.mxu0
    %v298 = vadd.f32 0.0, %v297
    %v299 = vpop.f32.mrf.mxu0
    %300 = vdwg.mxu0
    %v301 = vadd.f32 %v193, %v295
    %v302 = vadd.f32 %v194, %v298
    %303 = vst [vmem:[%s5] sm:$0xff] %v301
    %304 = vst [vmem:[%s5 + $0x8] sm:$0xff] %v302
    // Predicated region
    $region34: #{_mlp_call.1} parent=1 // pred_check
      %p305 = pneg %p49
    $region35: #{_mlp_call.1} parent=1 // pred_check_branch
      %307 = sbr.rel (%p305) target = $region37
    $region36: #{_mlp_call.1} parent=1 // pred_region
      %v308 = vld [vmem:[%s5] sm:$0xff]
      %v309 = vld [vmem:[%s5 + $0x8] sm:$0xff]
      %v310 = vld [vmem:[%s4] sm:$0x1]
      %v312 = vlaneseq
      %v313 = vshrl.u32 %v312, 7
      %v314 = vsub.s32 0, %v313
      %v315 = vrot.slane %v310, %v314
      %v317 = vadd.f32 %v308, %v315
      %v318 = vadd.f32 %v309, %v315
      %319 = vst [vmem:[%s5] sm:$0xff] %v317
      %320 = vst [vmem:[%s5 + $0x8] sm:$0xff] %v318
    $region37: #{_mlp_call.1} parent=1 // pred_fallthru
      _
    // Predicated region
    $region38: #{_mlp_call.1} parent=1 // pred_check
      _
    $region39: #{_mlp_call.1} parent=1 // pred_check_branch
      %322 = sbr.rel (0) target = $region41
    $region40: #{_mlp_call.1} parent=1 // pred_region
      _
    $region41: #{_mlp_call.1} parent=1 // pred_fallthru
      _
    // Predicated region
    $region42: #{_mlp_call.1} parent=1 // pred_check
      _
    $region43: #{_mlp_call.1} parent=1 // pred_check_branch
      %324 = sbr.rel (0) target = $region45
    $region44: #{_mlp_call.1} parent=1 // pred_region
      _
    $region45: #{_mlp_call.1} parent=1 // pred_fallthru
      _
    %325 = vsyncpa [#allocation3], 1
    %326 = vsyncpa [#allocation5], 1

</llo_original>
